<compile_context>
chip_gen: v5e
topology: v5e:2x2
jax: 0.10.0
libtpu: 0.0.40
codegen_flags: <defaults>
</compile_context>

<pallas_src>
import functools

import jax
import jax.numpy as jnp
from jax.experimental import pallas as pl
from jax.experimental.pallas import tpu as pltpu


# Above v5e's 16 MiB scoped default, comfortably inside v7x's 64 MiB physical VMEM.
_VMEM_LIMIT_BYTES = 32 * 1024 * 1024


def _round_up(x, m):
    return ((x + m - 1) // m) * m


def _min_parallel_steps(batch):
    """How many 'parallel' batch grid steps we want at minimum."""
    cores = 1
    try:
        cores = max(1, int(getattr(jax.devices()[0], "num_cores", 1)))
    except Exception:  # pragma: no cover - defensive, never fatal
        pass
    if cores > 1:
        # Dual-TensorCore chip (v7x / megacore): need >=2 steps or one core idles.
        return min(cores, max(1, batch))
    # Core count not exposed: splitting costs <1 us on 1-TC chips (v5e/v6e) but can
    # buy up to 2x on dual-TC chips, so split only when the batch is big enough.
    return 2 if batch >= 32 else 1


def _pick_batch_tile(batch, lane_cols, itemsize):
    """Batch-tile size for a (tb, lane_cols) block.

    Budgets the *padded* VMEM footprint (lane dim rounds up to 128) of the
    double-buffered input + output tiles, caps at ~1024 rows (HBM roofline is
    saturated well before that), and guarantees >=2 grid steps for dual-TC chips.
    Returns either the full batch or a multiple of 8 so the block stays legal.
    """
    budget = 8 * 1024 * 1024
    padded_row_bytes = _round_up(lane_cols, 128) * itemsize
    # 2 buffers (double buffering) x (input tile + output tile).
    max_rows = max(8, (budget // (4 * padded_row_bytes) // 8) * 8)
    max_rows = min(max_rows, 1024)
    tb = batch if batch <= max_rows else max_rows

    steps = _min_parallel_steps(batch)
    if steps > 1:
        tb = min(tb, max(8, _round_up(pl.cdiv(batch, steps), 8)))

    if batch < 8:
        return batch                      # full extent (always a legal block dim)
    return min(tb, batch)                 # either full batch or a multiple of 8


def _rsoftmax_kernel(radix, cardinality, inner, x_ref, o_ref):
    # x_ref: (tb, C) flat card-major channels : ch = c*radix*inner + r*inner + i
    # o_ref: (tb, C) flat radix-major channels: ch = r*card*inner  + c*inner + i
    # The (card, radix) transpose is fused into the static lane-window offsets of the
    # loads/stores below; no in-kernel relayout and no HBM transpose pass.
    # NOTE: rows of a partial (padded) last batch tile compute exp on garbage; those
    # rows are discarded by the block writeback (harmless, just noisy when debugging).
    ri = radix * inner
    ci = cardinality * inner

    for c in range(cardinality):
        in_base = c * ri

        def chunk(r, _base=in_base):
            # Static lane-window load of the (tb, inner) slab for radix r.
            return x_ref[:, _base + r * inner:_base + (r + 1) * inner].astype(jnp.float32)

        # 1) Running max over radix: R-1 element-wise VPU maxes (no XLU reduce).
        m = chunk(0)
        for r in range(1, radix):
            m = jnp.maximum(m, chunk(r))

        # 2) Write unnormalized exp straight into the output tile while accumulating
        #    the sum; only (m, s) stay live -> minimal vreg/VMEM-spill pressure.
        s = None
        for r in range(radix):
            e = jnp.exp(chunk(r) - m)                                  # EUP
            s = e if s is None else s + e
            o_ref[:, r * ci + c * inner:r * ci + (c + 1) * inner] = e.astype(o_ref.dtype)

        # 3) Normalize in place (lane-dense read-modify-write of the output tile).
        inv = pl.reciprocal(s, approx=True)                            # EUP rcp
        inv = inv * (2.0 - s * inv)   # one cheap Newton step -> ~f32 accuracy (VPU has slack)
        for r in range(radix):
            lo = r * ci + c * inner
            hi = lo + inner
            o_ref[:, lo:hi] = (o_ref[:, lo:hi].astype(jnp.float32) * inv).astype(o_ref.dtype)


def _sigmoid_kernel(x_ref, o_ref):
    x = x_ref[...].astype(jnp.float32)
    s = 1.0 + jnp.exp(-x)                                              # EUP
    inv = pl.reciprocal(s, approx=True)
    inv = inv * (2.0 - s * inv)
    o_ref[...] = inv.astype(o_ref.dtype)


def rsoftmax(x, radix, cardinality):
    """Forward pass matching rSoftMax.forward; `x` is the NCHW (B, C, 1, 1) fc2 output."""
    batch = x.shape[0]
    chans = 1
    for d in x.shape[1:]:
        chans *= d

    x2 = x.reshape(batch, chans)                           # free view of (B, C, 1, 1)
    tb = _pick_batch_tile(batch, chans, x.dtype.itemsize)
    grid = (pl.cdiv(batch, tb),)
    compiler_params = pltpu.CompilerParams(
        dimension_semantics=("parallel",),                 # batch tiles shard across TCs
        vmem_limit_bytes=_VMEM_LIMIT_BYTES)

    if radix > 1:
        assert chans % (radix * cardinality) == 0
        inner = chans // (radix * cardinality)
        # Output is emitted directly in the radix-major flat layout, i.e. exactly the
        # (batch, -1) tensor the PyTorch module returns -> no post reshape/transpose.
        return pl.pallas_call(
            functools.partial(_rsoftmax_kernel, radix, cardinality, inner),
            out_shape=jax.ShapeDtypeStruct((batch, chans), x.dtype),
            grid=grid,
            # Lane dim = full flat channel extent -> dense VMEM rows, contiguous HBM
            # DMAs, unmasked stores whenever chans is a multiple of 128.
            in_specs=[pl.BlockSpec((tb, chans), lambda i: (i, 0))],
            out_specs=pl.BlockSpec((tb, chans), lambda i: (i, 0)),
            compiler_params=compiler_params,
        )(x2)
    else:
        out = pl.pallas_call(
            _sigmoid_kernel,
            out_shape=jax.ShapeDtypeStruct((batch, chans), x.dtype),
            grid=grid,
            in_specs=[pl.BlockSpec((tb, chans), lambda i: (i, 0))],
            out_specs=pl.BlockSpec((tb, chans), lambda i: (i, 0)),
            compiler_params=compiler_params,
        )(x2)
        return out.reshape(x.shape)                        # torch.sigmoid keeps (B, C, 1, 1)


# Jitted entry point (keeps the surrounding free reshapes inside one XLA program).
rsoftmax_jit = jax.jit(rsoftmax, static_argnums=(1, 2))


def _rsoftmax_ref(x, radix, cardinality):
    """Pure-JAX reference mirroring the PyTorch code."""
    batch = x.shape[0]
    if radix > 1:
        xr = x.reshape(batch, cardinality, radix, -1)
        xr = jnp.transpose(xr, (0, 2, 1, 3))
        xr = jax.nn.softmax(xr, axis=1)
        return xr.reshape(batch, -1)
    return jax.nn.sigmoid(x)


if __name__ == "__main__":
    key = jax.random.PRNGKey(0)
    k0, k1, k2 = jax.random.split(key, 3)

    # Case 1: radix=2, cardinality=4  -> B=2, C=32 (inner=4; tiny/padded lane case).
    radix, cardinality = 2, 4
    B, C = 2, 32
    x = jax.random.normal(k0, (B, C, 1, 1), dtype=jnp.float32)
    out = jax.block_until_ready(rsoftmax_jit(x, radix, cardinality))
    ref = _rsoftmax_ref(x, radix, cardinality)
    assert out.shape == (B, C), out.shape
    assert jnp.allclose(out, ref, atol=1e-4, rtol=1e-4), "softmax branch mismatch (card=4)"

    # Case 2: realistic ResNeSt config: radix=2, cardinality=1, channels=128 -> C=256
    # (inner=128: fully lane-dense, unmasked stores).
    radix2, cardinality2 = 2, 1
    B2, C2 = 4, 256
    x2 = jax.random.normal(k1, (B2, C2, 1, 1), dtype=jnp.float32)
    out2 = jax.block_until_ready(rsoftmax_jit(x2, radix2, cardinality2))
    ref2 = _rsoftmax_ref(x2, radix2, cardinality2)
    assert out2.shape == (B2, C2), out2.shape
    assert jnp.allclose(out2, ref2, atol=1e-4, rtol=1e-4), "softmax branch mismatch (card=1)"

    # Case 3: radix == 1 branch (sigmoid), output keeps the (B, C, 1, 1) shape.
    x3 = jax.random.normal(k2, (B, 16, 1, 1), dtype=jnp.float32)
    out3 = jax.block_until_ready(rsoftmax_jit(x3, 1, cardinality))
    ref3 = _rsoftmax_ref(x3, 1, cardinality)
    assert out3.shape == x3.shape
    assert jnp.allclose(out3, ref3, atol=1e-4, rtol=1e-4), "sigmoid branch mismatch"

    print("KERNEL_OK")
</pallas_src>

<mosaic_0001>
module attributes {stable_mosaic.version = 11 : i64} {
  func.func @_rsoftmax_kernel(%arg0: i32, %arg1: memref<2x32xf32, #tpu.memory_space<vmem>>, %arg2: memref<2x32xf32, #tpu.memory_space<vmem>>) attributes {dimension_semantics = [#tpu.dimension_semantics<parallel>], iteration_bounds = array<i64: 1>, scalar_prefetch = 0 : i64, scratch_operands = 0 : i64, tpu.core_type = #tpu.core_type<tc>, window_params = [{transform_indices = @transform_0, window_bounds = array<i64: 2, 32>}, {transform_indices = @transform_1, window_bounds = array<i64: 2, 32>}]} {
    %c0 = arith.constant 0 : index
    %c0_0 = arith.constant 0 : index
    %0 = vector.load %arg1[%c0, %c0_0] : memref<2x32xf32, #tpu.memory_space<vmem>>, vector<2x4xf32>
    %c0_1 = arith.constant 0 : index
    %c4 = arith.constant 4 : index
    %1 = vector.load %arg1[%c0_1, %c4] : memref<2x32xf32, #tpu.memory_space<vmem>>, vector<2x4xf32>
    %2 = arith.maximumf %0, %1 : vector<2x4xf32>
    %c0_2 = arith.constant 0 : index
    %c0_3 = arith.constant 0 : index
    %3 = vector.load %arg1[%c0_2, %c0_3] : memref<2x32xf32, #tpu.memory_space<vmem>>, vector<2x4xf32>
    %4 = arith.subf %3, %2 : vector<2x4xf32>
    %5 = math.exp %4 : vector<2x4xf32>
    %c0_4 = arith.constant 0 : index
    %c0_5 = arith.constant 0 : index
    %6 = vector.load %arg2[%c0_4, %c0_5] : memref<2x32xf32, #tpu.memory_space<vmem>>, vector<2x4xf32>
    tpu.vector_store %arg2[%c0_4, %c0_5], %5 {strides = array<i32>} : memref<2x32xf32, #tpu.memory_space<vmem>>, vector<2x4xf32>,
    %c0_6 = arith.constant 0 : index
    %c4_7 = arith.constant 4 : index
    %7 = vector.load %arg1[%c0_6, %c4_7] : memref<2x32xf32, #tpu.memory_space<vmem>>, vector<2x4xf32>
    %8 = arith.subf %7, %2 : vector<2x4xf32>
    %9 = math.exp %8 : vector<2x4xf32>
    %10 = arith.addf %5, %9 : vector<2x4xf32>
    %c0_8 = arith.constant 0 : index
    %c16 = arith.constant 16 : index
    %11 = vector.load %arg2[%c0_8, %c16] : memref<2x32xf32, #tpu.memory_space<vmem>>, vector<2x4xf32>
    tpu.vector_store %arg2[%c0_8, %c16], %9 {strides = array<i32>} : memref<2x32xf32, #tpu.memory_space<vmem>>, vector<2x4xf32>,
    %12 = tpu.reciprocal %10 {approx = true} : vector<2x4xf32> -> vector<2x4xf32>
    %13 = arith.mulf %10, %12 : vector<2x4xf32>
    %cst = arith.constant 2.000000e+00 : f32
    %14 = vector.broadcast %cst : f32 to vector<2x4xf32>
    %15 = arith.subf %14, %13 : vector<2x4xf32>
    %16 = arith.mulf %12, %15 : vector<2x4xf32>
    %c0_9 = arith.constant 0 : index
    %c0_10 = arith.constant 0 : index
    %17 = vector.load %arg2[%c0_9, %c0_10] : memref<2x32xf32, #tpu.memory_space<vmem>>, vector<2x4xf32>
    %18 = arith.mulf %17, %16 : vector<2x4xf32>
    %c0_11 = arith.constant 0 : index
    %c0_12 = arith.constant 0 : index
    %19 = vector.load %arg2[%c0_11, %c0_12] : memref<2x32xf32, #tpu.memory_space<vmem>>, vector<2x4xf32>
    tpu.vector_store %arg2[%c0_11, %c0_12], %18 {strides = array<i32>} : memref<2x32xf32, #tpu.memory_space<vmem>>, vector<2x4xf32>,
    %c0_13 = arith.constant 0 : index
    %c16_14 = arith.constant 16 : index
    %20 = vector.load %arg2[%c0_13, %c16_14] : memref<2x32xf32, #tpu.memory_space<vmem>>, vector<2x4xf32>
    %21 = arith.mulf %20, %16 : vector<2x4xf32>
    %c0_15 = arith.constant 0 : index
    %c16_16 = arith.constant 16 : index
    %22 = vector.load %arg2[%c0_15, %c16_16] : memref<2x32xf32, #tpu.memory_space<vmem>>, vector<2x4xf32>
    tpu.vector_store %arg2[%c0_15, %c16_16], %21 {strides = array<i32>} : memref<2x32xf32, #tpu.memory_space<vmem>>, vector<2x4xf32>,
    %c0_17 = arith.constant 0 : index
    %c8 = arith.constant 8 : index
    %23 = vector.load %arg1[%c0_17, %c8] : memref<2x32xf32, #tpu.memory_space<vmem>>, vector<2x4xf32>
    %c0_18 = arith.constant 0 : index
    %c12 = arith.constant 12 : index
    %24 = vector.load %arg1[%c0_18, %c12] : memref<2x32xf32, #tpu.memory_space<vmem>>, vector<2x4xf32>
    %25 = arith.maximumf %23, %24 : vector<2x4xf32>
    %c0_19 = arith.constant 0 : index
    %c8_20 = arith.constant 8 : index
    %26 = vector.load %arg1[%c0_19, %c8_20] : memref<2x32xf32, #tpu.memory_space<vmem>>, vector<2x4xf32>
    %27 = arith.subf %26, %25 : vector<2x4xf32>
    %28 = math.exp %27 : vector<2x4xf32>
    %c0_21 = arith.constant 0 : index
    %c4_22 = arith.constant 4 : index
    %29 = vector.load %arg2[%c0_21, %c4_22] : memref<2x32xf32, #tpu.memory_space<vmem>>, vector<2x4xf32>
    tpu.vector_store %arg2[%c0_21, %c4_22], %28 {strides = array<i32>} : memref<2x32xf32, #tpu.memory_space<vmem>>, vector<2x4xf32>,
    %c0_23 = arith.constant 0 : index
    %c12_24 = arith.constant 12 : index
    %30 = vector.load %arg1[%c0_23, %c12_24] : memref<2x32xf32, #tpu.memory_space<vmem>>, vector<2x4xf32>
    %31 = arith.subf %30, %25 : vector<2x4xf32>
    %32 = math.exp %31 : vector<2x4xf32>
    %33 = arith.addf %28, %32 : vector<2x4xf32>
    %c0_25 = arith.constant 0 : index
    %c20 = arith.constant 20 : index
    %34 = vector.load %arg2[%c0_25, %c20] : memref<2x32xf32, #tpu.memory_space<vmem>>, vector<2x4xf32>
    tpu.vector_store %arg2[%c0_25, %c20], %32 {strides = array<i32>} : memref<2x32xf32, #tpu.memory_space<vmem>>, vector<2x4xf32>,
    %35 = tpu.reciprocal %33 {approx = true} : vector<2x4xf32> -> vector<2x4xf32>
    %36 = arith.mulf %33, %35 : vector<2x4xf32>
    %cst_26 = arith.constant 2.000000e+00 : f32
    %37 = vector.broadcast %cst_26 : f32 to vector<2x4xf32>
    %38 = arith.subf %37, %36 : vector<2x4xf32>
    %39 = arith.mulf %35, %38 : vector<2x4xf32>
    %c0_27 = arith.constant 0 : index
    %c4_28 = arith.constant 4 : index
    %40 = vector.load %arg2[%c0_27, %c4_28] : memref<2x32xf32, #tpu.memory_space<vmem>>, vector<2x4xf32>
    %41 = arith.mulf %40, %39 : vector<2x4xf32>
    %c0_29 = arith.constant 0 : index
    %c4_30 = arith.constant 4 : index
    %42 = vector.load %arg2[%c0_29, %c4_30] : memref<2x32xf32, #tpu.memory_space<vmem>>, vector<2x4xf32>
    tpu.vector_store %arg2[%c0_29, %c4_30], %41 {strides = array<i32>} : memref<2x32xf32, #tpu.memory_space<vmem>>, vector<2x4xf32>,
    %c0_31 = arith.constant 0 : index
    %c20_32 = arith.constant 20 : index
    %43 = vector.load %arg2[%c0_31, %c20_32] : memref<2x32xf32, #tpu.memory_space<vmem>>, vector<2x4xf32>
    %44 = arith.mulf %43, %39 : vector<2x4xf32>
    %c0_33 = arith.constant 0 : index
    %c20_34 = arith.constant 20 : index
    %45 = vector.load %arg2[%c0_33, %c20_34] : memref<2x32xf32, #tpu.memory_space<vmem>>, vector<2x4xf32>
    tpu.vector_store %arg2[%c0_33, %c20_34], %44 {strides = array<i32>} : memref<2x32xf32, #tpu.memory_space<vmem>>, vector<2x4xf32>,
    %c0_35 = arith.constant 0 : index
    %c16_36 = arith.constant 16 : index
    %46 = vector.load %arg1[%c0_35, %c16_36] : memref<2x32xf32, #tpu.memory_space<vmem>>, vector<2x4xf32>
    %c0_37 = arith.constant 0 : index
    %c20_38 = arith.constant 20 : index
    %47 = vector.load %arg1[%c0_37, %c20_38] : memref<2x32xf32, #tpu.memory_space<vmem>>, vector<2x4xf32>
    %48 = arith.maximumf %46, %47 : vector<2x4xf32>
    %c0_39 = arith.constant 0 : index
    %c16_40 = arith.constant 16 : index
    %49 = vector.load %arg1[%c0_39, %c16_40] : memref<2x32xf32, #tpu.memory_space<vmem>>, vector<2x4xf32>
    %50 = arith.subf %49, %48 : vector<2x4xf32>
    %51 = math.exp %50 : vector<2x4xf32>
    %c0_41 = arith.constant 0 : index
    %c8_42 = arith.constant 8 : index
    %52 = vector.load %arg2[%c0_41, %c8_42] : memref<2x32xf32, #tpu.memory_space<vmem>>, vector<2x4xf32>
    tpu.vector_store %arg2[%c0_41, %c8_42], %51 {strides = array<i32>} : memref<2x32xf32, #tpu.memory_space<vmem>>, vector<2x4xf32>,
    %c0_43 = arith.constant 0 : index
    %c20_44 = arith.constant 20 : index
    %53 = vector.load %arg1[%c0_43, %c20_44] : memref<2x32xf32, #tpu.memory_space<vmem>>, vector<2x4xf32>
    %54 = arith.subf %53, %48 : vector<2x4xf32>
    %55 = math.exp %54 : vector<2x4xf32>
    %56 = arith.addf %51, %55 : vector<2x4xf32>
    %c0_45 = arith.constant 0 : index
    %c24 = arith.constant 24 : index
    %57 = vector.load %arg2[%c0_45, %c24] : memref<2x32xf32, #tpu.memory_space<vmem>>, vector<2x4xf32>
    tpu.vector_store %arg2[%c0_45, %c24], %55 {strides = array<i32>} : memref<2x32xf32, #tpu.memory_space<vmem>>, vector<2x4xf32>,
    %58 = tpu.reciprocal %56 {approx = true} : vector<2x4xf32> -> vector<2x4xf32>
    %59 = arith.mulf %56, %58 : vector<2x4xf32>
    %cst_46 = arith.constant 2.000000e+00 : f32
    %60 = vector.broadcast %cst_46 : f32 to vector<2x4xf32>
    %61 = arith.subf %60, %59 : vector<2x4xf32>
    %62 = arith.mulf %58, %61 : vector<2x4xf32>
    %c0_47 = arith.constant 0 : index
    %c8_48 = arith.constant 8 : index
    %63 = vector.load %arg2[%c0_47, %c8_48] : memref<2x32xf32, #tpu.memory_space<vmem>>, vector<2x4xf32>
    %64 = arith.mulf %63, %62 : vector<2x4xf32>
    %c0_49 = arith.constant 0 : index
    %c8_50 = arith.constant 8 : index
    %65 = vector.load %arg2[%c0_49, %c8_50] : memref<2x32xf32, #tpu.memory_space<vmem>>, vector<2x4xf32>
    tpu.vector_store %arg2[%c0_49, %c8_50], %64 {strides = array<i32>} : memref<2x32xf32, #tpu.memory_space<vmem>>, vector<2x4xf32>,
    %c0_51 = arith.constant 0 : index
    %c24_52 = arith.constant 24 : index
    %66 = vector.load %arg2[%c0_51, %c24_52] : memref<2x32xf32, #tpu.memory_space<vmem>>, vector<2x4xf32>
    %67 = arith.mulf %66, %62 : vector<2x4xf32>
    %c0_53 = arith.constant 0 : index
    %c24_54 = arith.constant 24 : index
    %68 = vector.load %arg2[%c0_53, %c24_54] : memref<2x32xf32, #tpu.memory_space<vmem>>, vector<2x4xf32>
    tpu.vector_store %arg2[%c0_53, %c24_54], %67 {strides = array<i32>} : memref<2x32xf32, #tpu.memory_space<vmem>>, vector<2x4xf32>,
    %c0_55 = arith.constant 0 : index
    %c24_56 = arith.constant 24 : index
    %69 = vector.load %arg1[%c0_55, %c24_56] : memref<2x32xf32, #tpu.memory_space<vmem>>, vector<2x4xf32>
    %c0_57 = arith.constant 0 : index
    %c28 = arith.constant 28 : index
    %70 = vector.load %arg1[%c0_57, %c28] : memref<2x32xf32, #tpu.memory_space<vmem>>, vector<2x4xf32>
    %71 = arith.maximumf %69, %70 : vector<2x4xf32>
    %c0_58 = arith.constant 0 : index
    %c24_59 = arith.constant 24 : index
    %72 = vector.load %arg1[%c0_58, %c24_59] : memref<2x32xf32, #tpu.memory_space<vmem>>, vector<2x4xf32>
    %73 = arith.subf %72, %71 : vector<2x4xf32>
    %74 = math.exp %73 : vector<2x4xf32>
    %c0_60 = arith.constant 0 : index
    %c12_61 = arith.constant 12 : index
    %75 = vector.load %arg2[%c0_60, %c12_61] : memref<2x32xf32, #tpu.memory_space<vmem>>, vector<2x4xf32>
    tpu.vector_store %arg2[%c0_60, %c12_61], %74 {strides = array<i32>} : memref<2x32xf32, #tpu.memory_space<vmem>>, vector<2x4xf32>,
    %c0_62 = arith.constant 0 : index
    %c28_63 = arith.constant 28 : index
    %76 = vector.load %arg1[%c0_62, %c28_63] : memref<2x32xf32, #tpu.memory_space<vmem>>, vector<2x4xf32>
    %77 = arith.subf %76, %71 : vector<2x4xf32>
    %78 = math.exp %77 : vector<2x4xf32>
    %79 = arith.addf %74, %78 : vector<2x4xf32>
    %c0_64 = arith.constant 0 : index
    %c28_65 = arith.constant 28 : index
    %80 = vector.load %arg2[%c0_64, %c28_65] : memref<2x32xf32, #tpu.memory_space<vmem>>, vector<2x4xf32>
    tpu.vector_store %arg2[%c0_64, %c28_65], %78 {strides = array<i32>} : memref<2x32xf32, #tpu.memory_space<vmem>>, vector<2x4xf32>,
    %81 = tpu.reciprocal %79 {approx = true} : vector<2x4xf32> -> vector<2x4xf32>
    %82 = arith.mulf %79, %81 : vector<2x4xf32>
    %cst_66 = arith.constant 2.000000e+00 : f32
    %83 = vector.broadcast %cst_66 : f32 to vector<2x4xf32>
    %84 = arith.subf %83, %82 : vector<2x4xf32>
    %85 = arith.mulf %81, %84 : vector<2x4xf32>
    %c0_67 = arith.constant 0 : index
    %c12_68 = arith.constant 12 : index
    %86 = vector.load %arg2[%c0_67, %c12_68] : memref<2x32xf32, #tpu.memory_space<vmem>>, vector<2x4xf32>
    %87 = arith.mulf %86, %85 : vector<2x4xf32>
    %c0_69 = arith.constant 0 : index
    %c12_70 = arith.constant 12 : index
    %88 = vector.load %arg2[%c0_69, %c12_70] : memref<2x32xf32, #tpu.memory_space<vmem>>, vector<2x4xf32>
    tpu.vector_store %arg2[%c0_69, %c12_70], %87 {strides = array<i32>} : memref<2x32xf32, #tpu.memory_space<vmem>>, vector<2x4xf32>,
    %c0_71 = arith.constant 0 : index
    %c28_72 = arith.constant 28 : index
    %89 = vector.load %arg2[%c0_71, %c28_72] : memref<2x32xf32, #tpu.memory_space<vmem>>, vector<2x4xf32>
    %90 = arith.mulf %89, %85 : vector<2x4xf32>
    %c0_73 = arith.constant 0 : index
    %c28_74 = arith.constant 28 : index
    %91 = vector.load %arg2[%c0_73, %c28_74] : memref<2x32xf32, #tpu.memory_space<vmem>>, vector<2x4xf32>
    tpu.vector_store %arg2[%c0_73, %c28_74], %90 {strides = array<i32>} : memref<2x32xf32, #tpu.memory_space<vmem>>, vector<2x4xf32>,
    return
  }
  func.func @transform_0(%arg0: i32) -> (i32, i32) {
    %c0_i32 = arith.constant 0 : i32
    %c0_i32_0 = arith.constant 0 : i32
    return %arg0, %c0_i32 : i32, i32
  }
  func.func @transform_1(%arg0: i32) -> (i32, i32) {
    %c0_i32 = arith.constant 0 : i32
    %c0_i32_0 = arith.constant 0 : i32
    return %arg0, %c0_i32 : i32, i32
  }
}

</mosaic_0001>

<llo_original>
// kernel: rsoftmax.1
$region0: #{rsoftmax.1}
  #allocation0 [shape = 'u32[]', space=smem, size = 0x4, offset = 0x4, fixed_abs, tag = 'smem constant byte address 0x4 - core index']
  #allocation1 [shape = 'u32[72,128]{1,0:T(1,128)}', space=vmem, size = 0x9000, scoped, tag = 'internal scratch']
  %s0 = inlined_call_operand.hbm [shape: f32[2,32], index: 0, kind: input, shape index: {}]
  %s1 = inlined_call_operand.hbm [shape: f32[2,32], index: 1, kind: output, shape index: {}]
  %s2 = sld [smem:[#allocation0]]
  $region18: #{rsoftmax.1} parent=0
    _
  %s4 = ssub.s32 1, %s2
  %s5 = scalar_select 0, %s4, %s2
  $region1: #{rsoftmax.1} parent=0
    #allocation2 [shape = 'u8[1024]{0}', space=vmem, size = 0x400, scoped, tag = 'input window, operand 0, single buffered']
    #allocation3 [shape = 's32[1]{0}', space=sflag, size = 0x4, scoped, tag = 'scoped memory for rsoftmax.1']
    #allocation4 [shape = 's32[1]{0}', space=sflag, size = 0x4, scoped, tag = 'scoped memory for rsoftmax.1']
    #allocation5 [shape = 'u8[1024]{0}', space=vmem, size = 0x400, scoped, tag = 'output window, operand 0, single buffered']
    %6 = vsyncpa [#allocation3], 0
    %7 = vsyncpa [#allocation4], 0
    // Predicated region
    $region2: #{rsoftmax.1} parent=1 // pred_check
      _
    $region3: #{rsoftmax.1} parent=1 // pred_check_branch
      %9 = sbr.rel (0) target = $region5
    $region4: #{rsoftmax.1} parent=1 // pred_region
      %11 = vsyncadd [#allocation3], 0
      %s13 = sshll.u32 %s0, 4
      %s14 = int_to_ptr.hbm [resolvable:$true] %s13
      %s15 = sshll.u32 [#allocation2], 4
      %s16 = int_to_ptr.vmem [resolvable:$true] %s15
      %18 = dma.hbm_to_vmem [thread:$0]  %s14, 32, %s16, [#allocation3]
    $region5: #{rsoftmax.1} parent=1 // pred_fallthru
      _
    // Predicated region
    $region6: #{rsoftmax.1} parent=1 // pred_check
      _
    $region7: #{rsoftmax.1} parent=1 // pred_check_branch
      %20 = sbr.rel (0) target = $region9
    $region8: #{rsoftmax.1} parent=1 // pred_region
      %22 = dma.done [#allocation3], 32
    $region9: #{rsoftmax.1} parent=1 // pred_fallthru
      _
    %v23 = vld [vmem:[#allocation2] sm:$0x3]
    %25 = vrot.lane.b32.xlu0 %v23, 124
    %v26 = vpop.permute.xlu0 %25
    %v28 = vmax.f32 %v23, %v26
    %v29 = vsub.f32 %v23, %v28
    %v30 = vmul.f32 %v29, 1.442695
    %v31 = vpow.pop %v30
    %vm32 = vcmask 25600
    %33 = vst.msk [vmem:[#allocation5] sm:$0x3] %vm32, %v31
    %v34 = vld [vmem:[#allocation2] sm:$0x3]
    %36 = vrot.lane.b32.xlu0 %v28, 4
    %v37 = vpop.permute.xlu0 %36
    %v39 = vsub.f32 %v34, %v37
    %v40 = vmul.f32 %v39, 1.442695
    %v41 = vpow.pop %v40
    %43 = vrot.lane.b32.xlu0 %v41, 124
    %v44 = vpop.permute.xlu0 %43
    %v46 = vadd.f32 %v31, %v44
    %47 = vrot.lane.b32.xlu0 %v41, 12
    %v48 = vpop.permute.xlu0 %47
    %vm50 = vcmask 156800
    %51 = vst.msk [vmem:[#allocation5] sm:$0x3] %vm50, %v48
    %v52 = vrcp.pop %v46
    %v53 = vmul.f32 %v46, %v52
    %v54 = vsub.f32 2.0, %v53
    %v55 = vmul.f32 %v52, %v54
    %v56 = vld [vmem:[#allocation5] sm:$0x3]
    %v57 = vmul.f32 %v56, %v55
    %58 = vst.msk [vmem:[#allocation5] sm:$0x3] %vm32, %v57
    %v59 = vld [vmem:[#allocation5] sm:$0x3]
    %61 = vrot.lane.b32.xlu0 %v55, 16
    %v62 = vpop.permute.xlu0 %61
    %v64 = vmul.f32 %v59, %v62
    %65 = vst.msk [vmem:[#allocation5] sm:$0x3] %vm50, %v64
    %v66 = vld [vmem:[#allocation2] sm:$0x3]
    %68 = vrot.lane.b32.xlu0 %v66, 124
    %v69 = vpop.permute.xlu0 %68
    %v71 = vmax.f32 %v66, %v69
    %v72 = vsub.f32 %v66, %v71
    %v73 = vmul.f32 %v72, 1.442695
    %v74 = vpow.pop %v73
    %76 = vrot.lane.b32.xlu0 %v74, 124
    %v77 = vpop.permute.xlu0 %76
    %vm79 = vcmask 58400
    %80 = vst.msk [vmem:[#allocation5] sm:$0x3] %vm79, %v77
    %v81 = vld [vmem:[#allocation2] sm:$0x3]
    %83 = vrot.lane.b32.xlu0 %v71, 4
    %v84 = vpop.permute.xlu0 %83
    %v86 = vsub.f32 %v81, %v84
    %v87 = vmul.f32 %v86, 1.442695
    %v88 = vpow.pop %v87
    %90 = vrot.lane.b32.xlu0 %v88, 124
    %v91 = vpop.permute.xlu0 %90
    %v93 = vadd.f32 %v74, %v91
    %94 = vrot.lane.b32.xlu0 %v88, 8
    %v95 = vpop.permute.xlu0 %94
    %vm97 = vcmask 189600
    %98 = vst.msk [vmem:[#allocation5] sm:$0x3] %vm97, %v95
    %v99 = vrcp.pop %v93
    %v100 = vmul.f32 %v93, %v99
    %v101 = vsub.f32 2.0, %v100
    %v102 = vmul.f32 %v99, %v101
    %v103 = vld [vmem:[#allocation5] sm:$0x3]
    %105 = vrot.lane.b32.xlu0 %v102, 124
    %v106 = vpop.permute.xlu0 %105
    %v108 = vmul.f32 %v103, %v106
    %109 = vst.msk [vmem:[#allocation5] sm:$0x3] %vm79, %v108
    %v110 = vld [vmem:[#allocation5] sm:$0x3]
    %111 = vrot.lane.b32.xlu0 %v102, 12
    %v112 = vpop.permute.xlu0 %111
    %v114 = vmul.f32 %v110, %v112
    %115 = vst.msk [vmem:[#allocation5] sm:$0x3] %vm97, %v114
    %v116 = vld [vmem:[#allocation2] sm:$0x3]
    %118 = vrot.lane.b32.xlu0 %v116, 124
    %v119 = vpop.permute.xlu0 %118
    %v121 = vmax.f32 %v116, %v119
    %v122 = vsub.f32 %v116, %v121
    %v123 = vmul.f32 %v122, 1.442695
    %v124 = vpow.pop %v123
    %126 = vrot.lane.b32.xlu0 %v124, 120
    %v127 = vpop.permute.xlu0 %126
    %vm129 = vcmask 91200
    %130 = vst.msk [vmem:[#allocation5] sm:$0x3] %vm129, %v127
    %v131 = vld [vmem:[#allocation2] sm:$0x3]
    %133 = vrot.lane.b32.xlu0 %v121, 4
    %v134 = vpop.permute.xlu0 %133
    %v136 = vsub.f32 %v131, %v134
    %v137 = vmul.f32 %v136, 1.442695
    %v138 = vpow.pop %v137
    %140 = vrot.lane.b32.xlu0 %v138, 124
    %v141 = vpop.permute.xlu0 %140
    %v143 = vadd.f32 %v124, %v141
    %144 = vrot.lane.b32.xlu0 %v138, 4
    %v145 = vpop.permute.xlu0 %144
    %vm147 = vcmask 222400
    %148 = vst.msk [vmem:[#allocation5] sm:$0x3] %vm147, %v145
    %v149 = vrcp.pop %v143
    %v150 = vmul.f32 %v143, %v149
    %v151 = vsub.f32 2.0, %v150
    %v152 = vmul.f32 %v149, %v151
    %v153 = vld [vmem:[#allocation5] sm:$0x3]
    %155 = vrot.lane.b32.xlu0 %v152, 120
    %v156 = vpop.permute.xlu0 %155
    %v158 = vmul.f32 %v153, %v156
    %159 = vst.msk [vmem:[#allocation5] sm:$0x3] %vm129, %v158
    %v160 = vld [vmem:[#allocation5] sm:$0x3]
    %161 = vrot.lane.b32.xlu0 %v152, 8
    %v162 = vpop.permute.xlu0 %161
    %v164 = vmul.f32 %v160, %v162
    %165 = vst.msk [vmem:[#allocation5] sm:$0x3] %vm147, %v164
    %v166 = vld [vmem:[#allocation2] sm:$0x3]
    %168 = vrot.lane.b32.xlu0 %v166, 124
    %v169 = vpop.permute.xlu0 %168
    %v171 = vmax.f32 %v166, %v169
    %v172 = vsub.f32 %v166, %v171
    %v173 = vmul.f32 %v172, 1.442695
    %v174 = vpow.pop %v173
    %176 = vrot.lane.b32.xlu0 %v174, 116
    %v177 = vpop.permute.xlu0 %176
    %vm179 = vcmask 124000
    %180 = vst.msk [vmem:[#allocation5] sm:$0x3] %vm179, %v177
    %v181 = vld [vmem:[#allocation2] sm:$0x3]
    %183 = vrot.lane.b32.xlu0 %v171, 4
    %v184 = vpop.permute.xlu0 %183
    %v186 = vsub.f32 %v181, %v184
    %v187 = vmul.f32 %v186, 1.442695
    %v188 = vpow.pop %v187
    %190 = vrot.lane.b32.xlu0 %v188, 124
    %v191 = vpop.permute.xlu0 %190
    %v193 = vadd.f32 %v174, %v191
    %vm194 = vcmask 255200
    %195 = vst.msk [vmem:[#allocation5] sm:$0x3] %vm194, %v188
    %v196 = vrcp.pop %v193
    %v197 = vmul.f32 %v193, %v196
    %v198 = vsub.f32 2.0, %v197
    %v199 = vmul.f32 %v196, %v198
    %v200 = vld [vmem:[#allocation5] sm:$0x3]
    %202 = vrot.lane.b32.xlu0 %v199, 116
    %v203 = vpop.permute.xlu0 %202
    %v205 = vmul.f32 %v200, %v203
    %206 = vst.msk [vmem:[#allocation5] sm:$0x3] %vm179, %v205
    %v207 = vld [vmem:[#allocation5] sm:$0x3]
    %208 = vrot.lane.b32.xlu0 %v199, 4
    %v209 = vpop.permute.xlu0 %208
    %v211 = vmul.f32 %v207, %v209
    %212 = vst.msk [vmem:[#allocation5] sm:$0x3] %vm194, %v211
    // Predicated region
    $region10: #{rsoftmax.1} parent=1 // pred_check
      _
    $region11: #{rsoftmax.1} parent=1 // pred_check_branch
      %214 = sbr.rel (0) target = $region13
    $region12: #{rsoftmax.1} parent=1 // pred_region
      %216 = vsyncadd [#allocation4], 0
      %s218 = sshll.u32 [#allocation5], 4
      %s219 = int_to_ptr.vmem [resolvable:$true] %s218
      %s220 = sshll.u32 %s1, 4
      %s221 = int_to_ptr.hbm [resolvable:$true] %s220
      %223 = dma.vmem_to_hbm [thread:$0]  %s219, 32, %s221, [#allocation4]
    $region13: #{rsoftmax.1} parent=1 // pred_fallthru
      _
    // Predicated region
    $region14: #{rsoftmax.1} parent=1 // pred_check
      _
    $region15: #{rsoftmax.1} parent=1 // pred_check_branch
      %225 = sbr.rel (0) target = $region17
    $region16: #{rsoftmax.1} parent=1 // pred_region
      %227 = dma.done [#allocation4], 32
    $region17: #{rsoftmax.1} parent=1 // pred_fallthru
      _
    %228 = vsyncpa [#allocation3], 1
    %229 = vsyncpa [#allocation4], 1

</llo_original>
